<compile_context>
chip_gen: v5e
topology: v5e:2x2
jax: 0.10.0
libtpu: 0.0.40
codegen_flags: <defaults>
</compile_context>

<pallas_src>
import functools
import math

import jax
import jax.numpy as jnp
from jax import lax
from jax.experimental import pallas as pl
from jax.experimental.pallas import tpu as pltpu

LANE = 128       # class logits padded to a multiple of this (lane-dense stores)
BOX_PAD = 128    # lane width of the padded W3 / delta slab (MXU friendly)
REF_W = 8        # narrow reference-points / boxes slab streamed through HBM


def _round_up(x, m):
    return ((x + m - 1) // m) * m


# ----------------------------------------------------------------------------
# Pallas kernel: one grid step == (decoder layer l, row tile m)
# ----------------------------------------------------------------------------
def _head_kernel(x_ref, ref_ref,
                 wf_ref, bf_ref,
                 w2_ref, b2_ref,
                 w3_ref, b3_ref,
                 logits_ref, boxes_ref,
                 *, c_pad: int, ref_dim: int):
    # hidden states streamed as f32; cast to bf16 on the VPU (free in an
    # HBM/MXU-bound regime, and saves a wrapper-side conversion pass).
    x = x_ref[0].astype(jnp.bfloat16)                         # [TM, H]

    # --- fused (class head ++ bbox-MLP layer 1):  X @ [Wc | W1] ----------
    y = jnp.dot(x, wf_ref[0], preferred_element_type=jnp.float32) + bf_ref[0]
    logits_ref[0] = y[:, :c_pad].astype(logits_ref.dtype)     # lane-dense store
    h1 = jnp.maximum(y[:, c_pad:], 0.0).astype(jnp.bfloat16)

    # --- bbox MLP layers 2 & 3 (layer 3 lane-padded to 128 for the MXU) --
    h2 = jnp.maximum(
        jnp.dot(h1, w2_ref[0], preferred_element_type=jnp.float32) + b2_ref[0],
        0.0).astype(jnp.bfloat16)
    delta = jnp.dot(h2, w3_ref[0], preferred_element_type=jnp.float32) + b3_ref[0]

    # --- epilogue on the narrow 8-lane slab only --------------------------
    delta8 = delta[:, :REF_W]                                 # [TM, 8] f32
    ref = ref_ref[0]                                          # [TM, 8] f32 (zero padded)
    if ref_dim == 4:
        coord = jax.nn.sigmoid(ref + delta8)
    else:  # ref_dim == 2: cat([ref, sigmoid(delta)[..., 2:]]) then sigmoid,
        # implemented as a lane-iota select on the 8-lane slab.
        lane = lax.broadcasted_iota(jnp.int32, delta8.shape, 1)
        coord = jax.nn.sigmoid(jnp.where(lane < 2, ref, jax.nn.sigmoid(delta8)))
    boxes_ref[0] = coord.astype(boxes_ref.dtype)


# ----------------------------------------------------------------------------
# One-time parameter packing (hoisted out of the forward hot path)
# ----------------------------------------------------------------------------
def pack_rtdetr_params(params):
    """Pad / fuse / cast the per-layer weights once, in their final layout."""
    L, H, C = params["wc"].shape
    c_pad = _round_up(C, LANE)

    wc_p = jnp.pad(params["wc"], ((0, 0), (0, 0), (0, c_pad - C)))
    bc_p = jnp.pad(params["bc"], ((0, 0), (0, 0), (0, c_pad - C)))
    return {
        "w_fused": jnp.concatenate([wc_p, params["w1"]], axis=-1).astype(jnp.bfloat16),
        "b_fused": jnp.concatenate([bc_p, params["b1"]], axis=-1).astype(jnp.float32),
        "w2": params["w2"].astype(jnp.bfloat16),
        "b2": params["b2"].astype(jnp.float32),
        "w3": jnp.pad(params["w3"], ((0, 0), (0, 0), (0, BOX_PAD - 4))).astype(jnp.bfloat16),
        "b3": jnp.pad(params["b3"], ((0, 0), (0, 0), (0, BOX_PAD - 4))).astype(jnp.float32),
        "num_classes": C,
        "c_pad": c_pad,
        "hidden_dim": H,
        "num_layers": L,
    }


def _choose_tile(M: int, tile_m: int):
    """Pick a row-tile size: prefer full extent, then a divisor of M (mult of 8)."""
    if M <= tile_m:
        return M, M                                   # single full-extent tile, no pad
    start = tile_m - (tile_m % 8)
    for t in range(start, 7, -8):
        if M % t == 0:
            return t, M                               # divisor-friendly, no pad
    tm = max(start, 8)
    return tm, _round_up(M, tm)


def _vmem_bytes(tm, H, nf, c_pad):
    # double-buffered streaming tiles (x f32, ref f32, logits f32, boxes f32)
    tiles = tm * (H * 4 + REF_W * 4 + c_pad * 4 + REF_W * 4)
    # per-layer weights (double buffered across the L axis)
    weights = (H * nf * 2 + nf * 4 + H * H * 2 + H * 4
               + H * BOX_PAD * 2 + BOX_PAD * 4)
    # in-kernel intermediates (fused f32 result, h1/h2 bf16, delta f32)
    scratch = tm * nf * 4 + 2 * tm * H * 2 + tm * BOX_PAD * 4
    est = 2 * (tiles + weights) + scratch + (4 << 20)
    return int(min(max(est, 16 << 20), 64 << 20))


# ----------------------------------------------------------------------------
# Wrapper
# ----------------------------------------------------------------------------
def rtdetr_head_forward(hidden_states, reference_points, packed, *, tile_m=1024):
    """
    hidden_states:     [L, B, Q, H]  float32
    reference_points:  [L, B, Q, R]  float32,  R in {2, 4}
    packed:            output of pack_rtdetr_params (pre-fused weights)
    Returns: list (len L) of dicts {'pred_logits': [B,Q,C], 'pred_boxes': [B,Q,4]}
    """
    L, B, Q, H = hidden_states.shape
    R = reference_points.shape[-1]
    assert R in (2, 4)
    assert H == packed["hidden_dim"] and L == packed["num_layers"]
    C = packed["num_classes"]
    c_pad = packed["c_pad"]
    nf = c_pad + H                                  # fused output width
    M = B * Q

    tm, m_pad = _choose_tile(M, tile_m)
    n_m = m_pad // tm

    # ---- activations: no dtype conversion pass, minimal padding ----------
    x = hidden_states.reshape(L, M, H).astype(jnp.float32)
    ref = reference_points.reshape(L, M, R).astype(jnp.float32)
    if m_pad != M:
        x = jnp.pad(x, ((0, 0), (0, m_pad - M), (0, 0)))
    ref = jnp.pad(ref, ((0, 0), (0, m_pad - M), (0, REF_W - R)))

    def xmap(l, m):                 # activation / output tiles
        return (l, m, 0)

    def wmap(l, m):                 # constant across m -> weights stay resident
        return (l, 0, 0)

    grid_spec = pltpu.PrefetchScalarGridSpec(
        num_scalar_prefetch=0,
        grid=(L, n_m),                                 # M innermost
        in_specs=[
            pl.BlockSpec((1, tm, H), xmap),            # x (f32, cast in-kernel)
            pl.BlockSpec((1, tm, REF_W), xmap),        # reference points (narrow)
            pl.BlockSpec((1, H, nf), wmap),            # [Wc | W1] (bf16)
            pl.BlockSpec((1, 1, nf), wmap),            # [bc | b1] (f32)
            pl.BlockSpec((1, H, H), wmap),             # W2 (bf16)
            pl.BlockSpec((1, 1, H), wmap),             # b2 (f32)
            pl.BlockSpec((1, H, BOX_PAD), wmap),       # W3 (bf16, lane padded)
            pl.BlockSpec((1, 1, BOX_PAD), wmap),       # b3 (f32, lane padded)
        ],
        out_specs=[
            pl.BlockSpec((1, tm, c_pad), xmap),        # logits (lane dense)
            pl.BlockSpec((1, tm, REF_W), xmap),        # boxes  (narrow)
        ],
    )

    flops = 2 * L * m_pad * H * (nf + H + BOX_PAD)
    transcend = L * m_pad * REF_W * (2 if R == 2 else 1)
    bytes_accessed = (x.nbytes + ref.nbytes
                      + packed["w_fused"].nbytes + packed["b_fused"].nbytes
                      + packed["w2"].nbytes + packed["b2"].nbytes
                      + packed["w3"].nbytes + packed["b3"].nbytes
                      + L * m_pad * (c_pad + REF_W) * 4)

    logits, boxes = pl.pallas_call(
        functools.partial(_head_kernel, c_pad=c_pad, ref_dim=R),
        out_shape=[
            jax.ShapeDtypeStruct((L, m_pad, c_pad), jnp.float32),
            jax.ShapeDtypeStruct((L, m_pad, REF_W), jnp.float32),
        ],
        grid_spec=grid_spec,
        compiler_params=pltpu.CompilerParams(
            dimension_semantics=("parallel", "parallel"),
            vmem_limit_bytes=_vmem_bytes(tm, H, nf, c_pad)),
        cost_estimate=pl.CostEstimate(
            flops=flops,
            transcendentals=transcend,
            bytes_accessed=bytes_accessed),
    )(x, ref, packed["w_fused"], packed["b_fused"],
      packed["w2"], packed["b2"], packed["w3"], packed["b3"])

    logits = logits[:, :M, :C].reshape(L, B, Q, C)
    boxes = boxes[:, :M, :4].reshape(L, B, Q, 4)
    return [{"pred_logits": logits[l], "pred_boxes": boxes[l]} for l in range(L)]


# ----------------------------------------------------------------------------
# Deterministic parameter init (mirrors RTDETRHead._reset_parameters)
# ----------------------------------------------------------------------------
def init_params(key, num_layers, hidden_dim, num_classes):
    ks = jax.random.split(key, 6)
    scale = 1.0 / math.sqrt(hidden_dim)
    prior_prob = 0.01
    bias_value = -math.log((1.0 - prior_prob) / prior_prob)

    return {
        # class head: weight random, bias = -log((1-p)/p)
        "wc": jax.random.uniform(ks[0], (num_layers, hidden_dim, num_classes),
                                 jnp.float32, -scale, scale),
        "bc": jnp.full((num_layers, 1, num_classes), bias_value, jnp.float32),
        # bbox MLP layers 1 & 2: random
        "w1": jax.random.uniform(ks[1], (num_layers, hidden_dim, hidden_dim),
                                 jnp.float32, -scale, scale),
        "b1": jax.random.uniform(ks[2], (num_layers, 1, hidden_dim),
                                 jnp.float32, -scale, scale),
        "w2": jax.random.uniform(ks[3], (num_layers, hidden_dim, hidden_dim),
                                 jnp.float32, -scale, scale),
        "b2": jax.random.uniform(ks[4], (num_layers, 1, hidden_dim),
                                 jnp.float32, -scale, scale),
        # bbox MLP last layer: zeros (per _reset_parameters)
        "w3": jnp.zeros((num_layers, hidden_dim, 4), jnp.float32),
        "b3": jnp.zeros((num_layers, 1, 4), jnp.float32),
    }


# ----------------------------------------------------------------------------
# Pure-JAX f32 reference (mirrors the PyTorch forward exactly)
# ----------------------------------------------------------------------------
def _reference(hidden_states, reference_points, params):
    L = hidden_states.shape[0]
    outs = []
    for l in range(L):
        x = hidden_states[l]
        ref = reference_points[l]
        logits = x @ params["wc"][l] + params["bc"][l]
        h1 = jax.nn.relu(x @ params["w1"][l] + params["b1"][l])
        h2 = jax.nn.relu(h1 @ params["w2"][l] + params["b2"][l])
        delta = h2 @ params["w3"][l] + params["b3"][l]
        if ref.shape[-1] == 4:
            coord = jax.nn.sigmoid(ref + delta)
        else:
            d = jax.nn.sigmoid(delta)
            coord = jax.nn.sigmoid(jnp.concatenate([ref, d[..., 2:]], axis=-1))
        outs.append({"pred_logits": logits, "pred_boxes": coord})
    return outs


# ----------------------------------------------------------------------------
if __name__ == "__main__":
    # Small shapes consistent with the module's forward signature.
    num_layers = 3
    batch = 2
    num_queries = 8
    hidden_dim = 32
    num_classes = 16

    key = jax.random.PRNGKey(0)
    k_h, k_r4, k_p, k_w3, k_b3, k_r2 = jax.random.split(key, 6)

    hidden_states = jax.random.normal(
        k_h, (num_layers, batch, num_queries, hidden_dim), jnp.float32)
    reference_points4 = jax.random.uniform(
        k_r4, (num_layers, batch, num_queries, 4), jnp.float32)

    params = init_params(k_p, num_layers, hidden_dim, num_classes)
    packed = pack_rtdetr_params(params)      # one-time weight packing

    # ---- ref_dim == 4 path --------------------------------------------
    outputs = rtdetr_head_forward(hidden_states, reference_points4, packed)
    for o in outputs:
        jax.block_until_ready(o["pred_logits"])
        jax.block_until_ready(o["pred_boxes"])

    ref_out = _reference(hidden_states, reference_points4, params)
    for got, exp in zip(outputs, ref_out):
        # matmuls run in bf16 (f32 accumulation) -> relaxed tolerance vs f32 ref
        assert jnp.allclose(got["pred_logits"], exp["pred_logits"], atol=5e-2)
        assert jnp.allclose(got["pred_boxes"], exp["pred_boxes"], atol=2e-2)

    # ---- ref_dim == 2 path (non-zero last layer to exercise delta math) -
    params2 = dict(params)
    params2["w3"] = jax.random.uniform(
        k_w3, (num_layers, hidden_dim, 4), jnp.float32, -0.1, 0.1)
    params2["b3"] = jax.random.uniform(
        k_b3, (num_layers, 1, 4), jnp.float32, -0.1, 0.1)
    packed2 = pack_rtdetr_params(params2)
    reference_points2 = jax.random.uniform(
        k_r2, (num_layers, batch, num_queries, 2), jnp.float32)

    outputs2 = rtdetr_head_forward(hidden_states, reference_points2, packed2)
    for o in outputs2:
        jax.block_until_ready(o["pred_logits"])
        jax.block_until_ready(o["pred_boxes"])

    ref_out2 = _reference(hidden_states, reference_points2, params2)
    for got, exp in zip(outputs2, ref_out2):
        assert jnp.allclose(got["pred_logits"], exp["pred_logits"], atol=5e-2)
        assert jnp.allclose(got["pred_boxes"], exp["pred_boxes"], atol=2e-2)

    print("KERNEL_OK")
</pallas_src>

<mosaic_0001>
module attributes {stable_mosaic.version = 11 : i64} {
  func.func @_head_kernel(%arg0: i32, %arg1: i32, %arg2: memref<1x16x32xf32, #tpu.memory_space<vmem>>, %arg3: memref<1x16x8xf32, #tpu.memory_space<vmem>>, %arg4: memref<1x32x160xbf16, #tpu.memory_space<vmem>>, %arg5: memref<1x1x160xf32, #tpu.memory_space<vmem>>, %arg6: memref<1x32x32xbf16, #tpu.memory_space<vmem>>, %arg7: memref<1x1x32xf32, #tpu.memory_space<vmem>>, %arg8: memref<1x32x128xbf16, #tpu.memory_space<vmem>>, %arg9: memref<1x1x128xf32, #tpu.memory_space<vmem>>, %arg10: memref<1x16x128xf32, #tpu.memory_space<vmem>>, %arg11: memref<1x16x8xf32, #tpu.memory_space<vmem>>) attributes {dimension_semantics = [#tpu.dimension_semantics<parallel>, #tpu.dimension_semantics<parallel>], iteration_bounds = array<i64: 3, 1>, scalar_prefetch = 0 : i64, scratch_operands = 0 : i64, tpu.core_type = #tpu.core_type<tc>, window_params = [{transform_indices = @transform_0, window_bounds = array<i64: 1, 16, 32>}, {transform_indices = @transform_1, window_bounds = array<i64: 1, 16, 8>}, {transform_indices = @transform_2, window_bounds = array<i64: 1, 32, 160>}, {transform_indices = @transform_3, window_bounds = array<i64: 1, 1, 160>}, {transform_indices = @transform_4, window_bounds = array<i64: 1, 32, 32>}, {transform_indices = @transform_5, window_bounds = array<i64: 1, 1, 32>}, {transform_indices = @transform_6, window_bounds = array<i64: 1, 32, 128>}, {transform_indices = @transform_7, window_bounds = array<i64: 1, 1, 128>}, {transform_indices = @transform_8, window_bounds = array<i64: 1, 16, 128>}, {transform_indices = @transform_9, window_bounds = array<i64: 1, 16, 8>}]} {
    %c0 = arith.constant 0 : index
    %c0_0 = arith.constant 0 : index
    %c0_1 = arith.constant 0 : index
    %0 = vector.load %arg2[%c0, %c0_0, %c0_1] : memref<1x16x32xf32, #tpu.memory_space<vmem>>, vector<1x16x32xf32>
    %1 = vector.shape_cast %0 : vector<1x16x32xf32> to vector<16x32xf32>
    %2 = arith.truncf %1 : vector<16x32xf32> to vector<16x32xbf16>
    %c0_2 = arith.constant 0 : index
    %c0_3 = arith.constant 0 : index
    %c0_4 = arith.constant 0 : index
    %3 = vector.load %arg4[%c0_2, %c0_3, %c0_4] : memref<1x32x160xbf16, #tpu.memory_space<vmem>>, vector<1x32x160xbf16>
    %4 = vector.shape_cast %3 : vector<1x32x160xbf16> to vector<32x160xbf16>
    %cst = arith.constant dense<0.000000e+00> : vector<16x160xf32>
    %5 = tpu.matmul %2, %4, %cst {dimension_numbers = #tpu.dot_dimension_numbers<[1], [0], [0], [1], [0, 0, 1, 1], [], []>} : vector<16x32xbf16>, vector<32x160xbf16>, vector<16x160xf32> -> vector<16x160xf32>
    %c0_5 = arith.constant 0 : index
    %c0_6 = arith.constant 0 : index
    %c0_7 = arith.constant 0 : index
    %6 = vector.load %arg5[%c0_5, %c0_6, %c0_7] : memref<1x1x160xf32, #tpu.memory_space<vmem>>, vector<1x1x160xf32>
    %7 = vector.shape_cast %6 : vector<1x1x160xf32> to vector<1x160xf32>
    %8 = vector.broadcast %7 : vector<1x160xf32> to vector<16x160xf32>
    %9 = arith.addf %5, %8 : vector<16x160xf32>
    %10 = vector.extract_strided_slice %9 {offsets = [0, 0], sizes = [16, 128], strides = [1, 1]} : vector<16x160xf32> to vector<16x128xf32>
    %c0_8 = arith.constant 0 : index
    %c0_9 = arith.constant 0 : index
    %c0_10 = arith.constant 0 : index
    %11 = vector.load %arg10[%c0_8, %c0_9, %c0_10] : memref<1x16x128xf32, #tpu.memory_space<vmem>>, vector<1x16x128xf32>
    %12 = vector.shape_cast %11 : vector<1x16x128xf32> to vector<16x128xf32>
    %13 = vector.shape_cast %10 : vector<16x128xf32> to vector<1x16x128xf32>
    tpu.vector_store %arg10[%c0_8, %c0_9, %c0_10], %13 {strides = array<i32>} : memref<1x16x128xf32, #tpu.memory_space<vmem>>, vector<1x16x128xf32>,
    %14 = vector.extract_strided_slice %9 {offsets = [0, 128], sizes = [16, 32], strides = [1, 1]} : vector<16x160xf32> to vector<16x32xf32>
    %cst_11 = arith.constant 0.000000e+00 : f32
    %15 = vector.broadcast %cst_11 : f32 to vector<16x32xf32>
    %16 = arith.maximumf %14, %15 : vector<16x32xf32>
    %17 = arith.truncf %16 : vector<16x32xf32> to vector<16x32xbf16>
    %c0_12 = arith.constant 0 : index
    %c0_13 = arith.constant 0 : index
    %c0_14 = arith.constant 0 : index
    %18 = vector.load %arg6[%c0_12, %c0_13, %c0_14] : memref<1x32x32xbf16, #tpu.memory_space<vmem>>, vector<1x32x32xbf16>
    %19 = vector.shape_cast %18 : vector<1x32x32xbf16> to vector<32x32xbf16>
    %cst_15 = arith.constant dense<0.000000e+00> : vector<16x32xf32>
    %20 = tpu.matmul %17, %19, %cst_15 {dimension_numbers = #tpu.dot_dimension_numbers<[1], [0], [0], [1], [0, 0, 1, 1], [], []>} : vector<16x32xbf16>, vector<32x32xbf16>, vector<16x32xf32> -> vector<16x32xf32>
    %c0_16 = arith.constant 0 : index
    %c0_17 = arith.constant 0 : index
    %c0_18 = arith.constant 0 : index
    %21 = vector.load %arg7[%c0_16, %c0_17, %c0_18] : memref<1x1x32xf32, #tpu.memory_space<vmem>>, vector<1x1x32xf32>
    %22 = vector.shape_cast %21 : vector<1x1x32xf32> to vector<1x32xf32>
    %23 = vector.broadcast %22 : vector<1x32xf32> to vector<16x32xf32>
    %24 = arith.addf %20, %23 : vector<16x32xf32>
    %cst_19 = arith.constant 0.000000e+00 : f32
    %25 = vector.broadcast %cst_19 : f32 to vector<16x32xf32>
    %26 = arith.maximumf %24, %25 : vector<16x32xf32>
    %27 = arith.truncf %26 : vector<16x32xf32> to vector<16x32xbf16>
    %c0_20 = arith.constant 0 : index
    %c0_21 = arith.constant 0 : index
    %c0_22 = arith.constant 0 : index
    %28 = vector.load %arg8[%c0_20, %c0_21, %c0_22] : memref<1x32x128xbf16, #tpu.memory_space<vmem>>, vector<1x32x128xbf16>
    %29 = vector.shape_cast %28 : vector<1x32x128xbf16> to vector<32x128xbf16>
    %cst_23 = arith.constant dense<0.000000e+00> : vector<16x128xf32>
    %30 = tpu.matmul %27, %29, %cst_23 {dimension_numbers = #tpu.dot_dimension_numbers<[1], [0], [0], [1], [0, 0, 1, 1], [], []>} : vector<16x32xbf16>, vector<32x128xbf16>, vector<16x128xf32> -> vector<16x128xf32>
    %c0_24 = arith.constant 0 : index
    %c0_25 = arith.constant 0 : index
    %c0_26 = arith.constant 0 : index
    %31 = vector.load %arg9[%c0_24, %c0_25, %c0_26] : memref<1x1x128xf32, #tpu.memory_space<vmem>>, vector<1x1x128xf32>
    %32 = vector.shape_cast %31 : vector<1x1x128xf32> to vector<1x128xf32>
    %33 = vector.broadcast %32 : vector<1x128xf32> to vector<16x128xf32>
    %34 = arith.addf %30, %33 : vector<16x128xf32>
    %35 = vector.extract_strided_slice %34 {offsets = [0, 0], sizes = [16, 8], strides = [1, 1]} : vector<16x128xf32> to vector<16x8xf32>
    %c0_27 = arith.constant 0 : index
    %c0_28 = arith.constant 0 : index
    %c0_29 = arith.constant 0 : index
    %36 = vector.load %arg3[%c0_27, %c0_28, %c0_29] : memref<1x16x8xf32, #tpu.memory_space<vmem>>, vector<1x16x8xf32>
    %37 = vector.shape_cast %36 : vector<1x16x8xf32> to vector<16x8xf32>
    %38 = arith.addf %37, %35 : vector<16x8xf32>
    %39 = arith.negf %38 : vector<16x8xf32>
    %40 = math.exp %39 : vector<16x8xf32>
    %cst_30 = arith.constant 1.000000e+00 : f32
    %41 = vector.broadcast %cst_30 : f32 to vector<16x8xf32>
    %42 = arith.addf %41, %40 : vector<16x8xf32>
    %43 = arith.divf %41, %42 : vector<16x8xf32>
    %c0_31 = arith.constant 0 : index
    %c0_32 = arith.constant 0 : index
    %c0_33 = arith.constant 0 : index
    %44 = vector.load %arg11[%c0_31, %c0_32, %c0_33] : memref<1x16x8xf32, #tpu.memory_space<vmem>>, vector<1x16x8xf32>
    %45 = vector.shape_cast %44 : vector<1x16x8xf32> to vector<16x8xf32>
    %46 = vector.shape_cast %43 : vector<16x8xf32> to vector<1x16x8xf32>
    tpu.vector_store %arg11[%c0_31, %c0_32, %c0_33], %46 {strides = array<i32>} : memref<1x16x8xf32, #tpu.memory_space<vmem>>, vector<1x16x8xf32>,
    return
  }
  func.func @transform_0(%arg0: i32, %arg1: i32) -> (i32, i32, i32) {
    %c0_i32 = arith.constant 0 : i32
    %c0_i32_0 = arith.constant 0 : i32
    return %arg0, %arg1, %c0_i32 : i32, i32, i32
  }
  func.func @transform_1(%arg0: i32, %arg1: i32) -> (i32, i32, i32) {
    %c0_i32 = arith.constant 0 : i32
    %c0_i32_0 = arith.constant 0 : i32
    return %arg0, %arg1, %c0_i32 : i32, i32, i32
  }
  func.func @transform_2(%arg0: i32, %arg1: i32) -> (i32, i32, i32) {
    %c0_i32 = arith.constant 0 : i32
    %c0_i32_0 = arith.constant 0 : i32
    %c0_i32_1 = arith.constant 0 : i32
    return %arg0, %c0_i32, %c0_i32_0 : i32, i32, i32
  }
  func.func @transform_3(%arg0: i32, %arg1: i32) -> (i32, i32, i32) {
    %c0_i32 = arith.constant 0 : i32
    %c0_i32_0 = arith.constant 0 : i32
    %c0_i32_1 = arith.constant 0 : i32
    return %arg0, %c0_i32, %c0_i32_0 : i32, i32, i32
  }
  func.func @transform_4(%arg0: i32, %arg1: i32) -> (i32, i32, i32) {
    %c0_i32 = arith.constant 0 : i32
    %c0_i32_0 = arith.constant 0 : i32
    %c0_i32_1 = arith.constant 0 : i32
    return %arg0, %c0_i32, %c0_i32_0 : i32, i32, i32
  }
  func.func @transform_5(%arg0: i32, %arg1: i32) -> (i32, i32, i32) {
    %c0_i32 = arith.constant 0 : i32
    %c0_i32_0 = arith.constant 0 : i32
    %c0_i32_1 = arith.constant 0 : i32
    return %arg0, %c0_i32, %c0_i32_0 : i32, i32, i32
  }
  func.func @transform_6(%arg0: i32, %arg1: i32) -> (i32, i32, i32) {
    %c0_i32 = arith.constant 0 : i32
    %c0_i32_0 = arith.constant 0 : i32
    %c0_i32_1 = arith.constant 0 : i32
    return %arg0, %c0_i32, %c0_i32_0 : i32, i32, i32
  }
  func.func @transform_7(%arg0: i32, %arg1: i32) -> (i32, i32, i32) {
    %c0_i32 = arith.constant 0 : i32
    %c0_i32_0 = arith.constant 0 : i32
    %c0_i32_1 = arith.constant 0 : i32
    return %arg0, %c0_i32, %c0_i32_0 : i32, i32, i32
  }
  func.func @transform_8(%arg0: i32, %arg1: i32) -> (i32, i32, i32) {
    %c0_i32 = arith.constant 0 : i32
    %c0_i32_0 = arith.constant 0 : i32
    return %arg0, %arg1, %c0_i32 : i32, i32, i32
  }
  func.func @transform_9(%arg0: i32, %arg1: i32) -> (i32, i32, i32) {
    %c0_i32 = arith.constant 0 : i32
    %c0_i32_0 = arith.constant 0 : i32
    return %arg0, %arg1, %c0_i32 : i32, i32, i32
  }
}

</mosaic_0001>

<llo_original>
// kernel: tpu_custom_call.1
$region0: #{tpu_custom_call.1}
  #allocation0 [shape = 'u32[]', space=smem, size = 0x4, offset = 0x4, fixed_abs, tag = 'smem constant byte address 0x4 - core index']
  #allocation1 [shape = 'u32[72,128]{1,0:T(1,128)}', space=vmem, size = 0x9000, scoped, tag = 'internal scratch']
  %s0 = inlined_call_operand.vmem [shape: f32[3,16,32], index: 0, kind: input, shape index: {}]
  %s1 = inlined_call_operand.vmem [shape: f32[3,16,8], index: 1, kind: input, shape index: {}]
  %s2 = inlined_call_operand.hbm [shape: bf16[3,32,160], index: 2, kind: input, shape index: {}]
  %s3 = inlined_call_operand.vmem [shape: f32[3,1,160], index: 3, kind: input, shape index: {}]
  %s4 = inlined_call_operand.hbm [shape: bf16[3,32,32], index: 4, kind: input, shape index: {}]
  %s5 = inlined_call_operand.vmem [shape: f32[3,1,32], index: 5, kind: input, shape index: {}]
  %s6 = inlined_call_operand.hbm [shape: bf16[3,32,128], index: 6, kind: input, shape index: {}]
  %s7 = inlined_call_operand.vmem [shape: f32[3,1,128], index: 7, kind: input, shape index: {}]
  %s8 = inlined_call_operand.hbm [shape: f32[3,16,128], index: 8, kind: output, shape index: {0}]
  %s9 = inlined_call_operand.vmem [shape: f32[3,16,8], index: 9, kind: output, shape index: {1}]
  %10 = xla_tuple %s8, %s9
  %s11 = sld [smem:[#allocation0]]
  $region85: #{tpu_custom_call.1} parent=0
    _
  %s13 = ssub.s32 1, %s11
  %s14 = scalar_select 0, %s13, %s11
  $region1: #{tpu_custom_call.1} parent=0
    #allocation2 [shape = 'u8[32768]{0}', space=vmem, size = 0x8000, scoped, tag = 'input window, operand 2']
    #allocation3 [shape = 's32[2]{0}', space=sflag, size = 0x8, scoped, tag = 'scoped memory for tpu_custom_call.1']
    #allocation4 [shape = 's32[2]{0}', space=sflag, size = 0x8, scoped, tag = 'scoped memory for tpu_custom_call.1']
    #allocation5 [shape = 'u8[16384]{0}', space=vmem, size = 0x4000, scoped, tag = 'input window, operand 4']
    #allocation6 [shape = 's32[2]{0}', space=sflag, size = 0x8, scoped, tag = 'scoped memory for tpu_custom_call.1']
    #allocation7 [shape = 'u8[16384]{0}', space=vmem, size = 0x4000, scoped, tag = 'input window, operand 6']
    #allocation8 [shape = 'u8[16384]{0}', space=vmem, size = 0x4000, scoped, tag = 'output window, operand 0']
    %15 = vsyncpa [#allocation3], 0
    %s16 = scalar_lea.sflag [#allocation3], 1
    %17 = vsyncpa %s16, 0
    %18 = vsyncpa [#allocation6], 0
    %s19 = scalar_lea.sflag [#allocation6], 1
    %20 = vsyncpa %s19, 0
    %21 = vsyncpa [#allocation4], 0
    %s22 = scalar_lea.sflag [#allocation4], 1
    %23 = vsyncpa %s22, 0
    loop: start=0, step=1, limit=5
    $region2: #{tpu_custom_call.1} parent=1 // loop_pre_header
      _
    $region3: #{tpu_custom_call.1} parent=1 // loop_header
      %s25 = sphi 0, %s29
      %p26 = scmp.ge.s32.totalorder %s25, 5
      %s32 = sphi 0, %s44
      %s33 = sphi 0, %s40
      %s34 = sphi 0, %s32
      %s35 = sphi 0, %s33
      %s36 = sphi 0, %s34
      %s37 = sphi 0, %s35
      %s49 = sphi 0, %s51
      %s52 = sphi 0, %s49
      %s53 = sphi 0, %s52
      %s69 = sphi 0, %s53
      %s77 = sphi 0, %s79
      %s80 = sphi 0, %s77
      %s81 = sphi 0, %s80
      %s97 = sphi 0, %s81
      %s103 = sphi 0, %s105
      %s106 = sphi 0, %s103
      %s107 = sphi 0, %s106
      %s123 = sphi 0, %s107
      %s129 = sphi 0, %s131
      %s132 = sphi 0, %s129
      %s133 = sphi 0, %s132
      %s149 = sphi 0, %s133
      %s155 = sphi 0, %s157
      %s158 = sphi 0, %s155
      %s159 = sphi 0, %s158
      %s175 = sphi 0, %s159
      %s181 = sphi 0, %s183
      %s184 = sphi 0, %s181
      %s185 = sphi 0, %s184
      %s201 = sphi 0, %s185
      %s207 = sphi 0, %s209
      %s210 = sphi 0, %s207
      %s211 = sphi 0, %s210
      %s227 = sphi 0, %s211
      %s233 = sphi 0, %s235
      %s236 = sphi 0, %s233
      %s237 = sphi 0, %s236
      %s253 = sphi 0, %s237
      %s261 = sphi 0, %s263
      %s264 = sphi 0, %s261
      %s265 = sphi 0, %s264
      %s281 = sphi 0, %s265
      %s289 = sphi 0, %s291
      %s292 = sphi 0, %s289
      %s293 = sphi 0, %s292
      %s309 = sphi 0, %s293
    $region4: #{tpu_custom_call.1} parent=1 // loop_header_branch
      %28 = sbr.rel (%p26) target = $region8
    $region5: #{tpu_custom_call.1} parent=1 // loop_body
      %s30 = ssub.s32 %s25, 1
      %s31 = ssub.s32 %s25, 2
      %s38 = sadd.s32 1, %s33
      %p39 = scmp.ge.s32.totalorder %s38, 1
      %s40 = scalar_select %p39, 0, %s38
      %s41 = sadd.s32 1, %s32
      %s42 = scalar_select %p39, %s41, %s32
      %p43 = scmp.ge.s32.totalorder %s42, 3
      %s44 = scalar_select %p43, 0, %s42
      %s45 = ssub.s32 %s32, %s44
      %s46 = ssub.s32 %s33, %s40
      %s47 = sor.u32 %s45, %s46
      %p48 = scmp.eq.s32.totalorder %s47, 0
      %s50 = sadd.s32 %s49, 1
      %s51 = scalar_select %p48, %s49, %s50
      %p54 = pneg %p48
      %p55 = scmp.eq.s32.totalorder %s25, 2
      %p56 = por %p54, %p55
      %p57 = scmp.ne.s32.totalorder %s49, %s52
      %p58 = scmp.eq.s32.totalorder %s25, 0
      %p59 = por %p57, %p58
      %p60 = scmp.ne.s32.totalorder %s49, %s52
      %p61 = scmp.eq.s32.totalorder %s30, 2
      %p62 = por %p60, %p61
      %p63 = scmp.ne.s32.totalorder %s52, %s53
      %p64 = scmp.eq.s32.totalorder %s30, 0
      %p65 = por %p63, %p64
      %p66 = scmp.ne.s32.totalorder %s52, %s53
      %p67 = scmp.eq.s32.totalorder %s31, 2
      %p68 = por %p66, %p67
      %p70 = scmp.ne.s32.totalorder %s53, %s69
      %p71 = scmp.eq.s32.totalorder %s31, 0
      %p72 = por %p70, %p71
      %s73 = ssub.s32 %s32, %s44
      %s74 = ssub.s32 %s33, %s40
      %s75 = sor.u32 %s73, %s74
      %p76 = scmp.eq.s32.totalorder %s75, 0
      %s78 = sadd.s32 %s77, 1
      %s79 = scalar_select %p76, %s77, %s78
      %p82 = pneg %p76
      %p83 = scmp.eq.s32.totalorder %s25, 2
      %p84 = por %p82, %p83
      %p85 = scmp.ne.s32.totalorder %s77, %s80
      %p86 = scmp.eq.s32.totalorder %s25, 0
      %p87 = por %p85, %p86
      %p88 = scmp.ne.s32.totalorder %s77, %s80
      %p89 = scmp.eq.s32.totalorder %s30, 2
      %p90 = por %p88, %p89
      %p91 = scmp.ne.s32.totalorder %s80, %s81
      %p92 = scmp.eq.s32.totalorder %s30, 0
      %p93 = por %p91, %p92
      %p94 = scmp.ne.s32.totalorder %s80, %s81
      %p95 = scmp.eq.s32.totalorder %s31, 2
      %p96 = por %p94, %p95
      %p98 = scmp.ne.s32.totalorder %s81, %s97
      %p99 = scmp.eq.s32.totalorder %s31, 0
      %p100 = por %p98, %p99
      %s101 = ssub.s32 %s32, %s44
      %p102 = scmp.eq.s32.totalorder %s101, 0
      %s104 = sadd.s32 %s103, 1
      %s105 = scalar_select %p102, %s103, %s104
      %p108 = pneg %p102
      %p109 = scmp.eq.s32.totalorder %s25, 2
      %p110 = por %p108, %p109
      %p111 = scmp.ne.s32.totalorder %s103, %s106
      %p112 = scmp.eq.s32.totalorder %s25, 0
      %p113 = por %p111, %p112
      %p114 = scmp.ne.s32.totalorder %s103, %s106
      %p115 = scmp.eq.s32.totalorder %s30, 2
      %p116 = por %p114, %p115
      %p117 = scmp.ne.s32.totalorder %s106, %s107
      %p118 = scmp.eq.s32.totalorder %s30, 0
      %p119 = por %p117, %p118
      %p120 = scmp.ne.s32.totalorder %s106, %s107
      %p121 = scmp.eq.s32.totalorder %s31, 2
      %p122 = por %p120, %p121
      %p124 = scmp.ne.s32.totalorder %s107, %s123
      %p125 = scmp.eq.s32.totalorder %s31, 0
      %p126 = por %p124, %p125
      %s127 = ssub.s32 %s32, %s44
      %p128 = scmp.eq.s32.totalorder %s127, 0
      %s130 = sadd.s32 %s129, 1
      %s131 = scalar_select %p128, %s129, %s130
      %p134 = pneg %p128
      %p135 = scmp.eq.s32.totalorder %s25, 2
      %p136 = por %p134, %p135
      %p137 = scmp.ne.s32.totalorder %s129, %s132
      %p138 = scmp.eq.s32.totalorder %s25, 0
      %p139 = por %p137, %p138
      %p140 = scmp.ne.s32.totalorder %s129, %s132
      %p141 = scmp.eq.s32.totalorder %s30, 2
      %p142 = por %p140, %p141
      %p143 = scmp.ne.s32.totalorder %s132, %s133
      %p144 = scmp.eq.s32.totalorder %s30, 0
      %p145 = por %p143, %p144
      %p146 = scmp.ne.s32.totalorder %s132, %s133
      %p147 = scmp.eq.s32.totalorder %s31, 2
      %p148 = por %p146, %p147
      %p150 = scmp.ne.s32.totalorder %s133, %s149
      %p151 = scmp.eq.s32.totalorder %s31, 0
      %p152 = por %p150, %p151
      %s153 = ssub.s32 %s32, %s44
      %p154 = scmp.eq.s32.totalorder %s153, 0
      %s156 = sadd.s32 %s155, 1
      %s157 = scalar_select %p154, %s155, %s156
      %p160 = pneg %p154
      %p161 = scmp.eq.s32.totalorder %s25, 2
      %p162 = por %p160, %p161
      %p163 = scmp.ne.s32.totalorder %s155, %s158
      %p164 = scmp.eq.s32.totalorder %s25, 0
      %p165 = por %p163, %p164
      %p166 = scmp.ne.s32.totalorder %s155, %s158
      %p167 = scmp.eq.s32.totalorder %s30, 2
      %p168 = por %p166, %p167
      %p169 = scmp.ne.s32.totalorder %s158, %s159
      %p170 = scmp.eq.s32.totalorder %s30, 0
      %p171 = por %p169, %p170
      %p172 = scmp.ne.s32.totalorder %s158, %s159
      %p173 = scmp.eq.s32.totalorder %s31, 2
      %p174 = por %p172, %p173
      %p176 = scmp.ne.s32.totalorder %s159, %s175
      %p177 = scmp.eq.s32.totalorder %s31, 0
      %p178 = por %p176, %p177
      %s179 = ssub.s32 %s32, %s44
      %p180 = scmp.eq.s32.totalorder %s179, 0
      %s182 = sadd.s32 %s181, 1
      %s183 = scalar_select %p180, %s181, %s182
      %p186 = pneg %p180
      %p187 = scmp.eq.s32.totalorder %s25, 2
      %p188 = por %p186, %p187
      %p189 = scmp.ne.s32.totalorder %s181, %s184
      %p190 = scmp.eq.s32.totalorder %s25, 0
      %p191 = por %p189, %p190
      %p192 = scmp.ne.s32.totalorder %s181, %s184
      %p193 = scmp.eq.s32.totalorder %s30, 2
      %p194 = por %p192, %p193
      %p195 = scmp.ne.s32.totalorder %s184, %s185
      %p196 = scmp.eq.s32.totalorder %s30, 0
      %p197 = por %p195, %p196
      %p198 = scmp.ne.s32.totalorder %s184, %s185
      %p199 = scmp.eq.s32.totalorder %s31, 2
      %p200 = por %p198, %p199
      %p202 = scmp.ne.s32.totalorder %s185, %s201
      %p203 = scmp.eq.s32.totalorder %s31, 0
      %p204 = por %p202, %p203
      %s205 = ssub.s32 %s32, %s44
      %p206 = scmp.eq.s32.totalorder %s205, 0
      %s208 = sadd.s32 %s207, 1
      %s209 = scalar_select %p206, %s207, %s208
      %p212 = pneg %p206
      %p213 = scmp.eq.s32.totalorder %s25, 2
      %p214 = por %p212, %p213
      %p215 = scmp.ne.s32.totalorder %s207, %s210
      %p216 = scmp.eq.s32.totalorder %s25, 0
      %p217 = por %p215, %p216
      %p218 = scmp.ne.s32.totalorder %s207, %s210
      %p219 = scmp.eq.s32.totalorder %s30, 2
      %p220 = por %p218, %p219
      %p221 = scmp.ne.s32.totalorder %s210, %s211
      %p222 = scmp.eq.s32.totalorder %s30, 0
      %p223 = por %p221, %p222
      %p224 = scmp.ne.s32.totalorder %s210, %s211
      %p225 = scmp.eq.s32.totalorder %s31, 2
      %p226 = por %p224, %p225
      %p228 = scmp.ne.s32.totalorder %s211, %s227
      %p229 = scmp.eq.s32.totalorder %s31, 0
      %p230 = por %p228, %p229
      %s231 = ssub.s32 %s32, %s44
      %p232 = scmp.eq.s32.totalorder %s231, 0
      %s234 = sadd.s32 %s233, 1
      %s235 = scalar_select %p232, %s233, %s234
      %p238 = pneg %p232
      %p239 = scmp.eq.s32.totalorder %s25, 2
      %p240 = por %p238, %p239
      %p241 = scmp.ne.s32.totalorder %s233, %s236
      %p242 = scmp.eq.s32.totalorder %s25, 0
      %p243 = por %p241, %p242
      %p244 = scmp.ne.s32.totalorder %s233, %s236
      %p245 = scmp.eq.s32.totalorder %s30, 2
      %p246 = por %p244, %p245
      %p247 = scmp.ne.s32.totalorder %s236, %s237
      %p248 = scmp.eq.s32.totalorder %s30, 0
      %p249 = por %p247, %p248
      %p250 = scmp.ne.s32.totalorder %s236, %s237
      %p251 = scmp.eq.s32.totalorder %s31, 2
      %p252 = por %p250, %p251
      %p254 = scmp.ne.s32.totalorder %s237, %s253
      %p255 = scmp.eq.s32.totalorder %s31, 0
      %p256 = por %p254, %p255
      %s257 = ssub.s32 %s32, %s44
      %s258 = ssub.s32 %s33, %s40
      %s259 = sor.u32 %s257, %s258
      %p260 = scmp.eq.s32.totalorder %s259, 0
      %s262 = sadd.s32 %s261, 1
      %s263 = scalar_select %p260, %s261, %s262
      %p266 = pneg %p260
      %p267 = scmp.eq.s32.totalorder %s25, 2
      %p268 = por %p266, %p267
      %p269 = scmp.ne.s32.totalorder %s261, %s264
      %p270 = scmp.eq.s32.totalorder %s25, 0
      %p271 = por %p269, %p270
      %p272 = scmp.ne.s32.totalorder %s261, %s264
      %p273 = scmp.eq.s32.totalorder %s30, 2
      %p274 = por %p272, %p273
      %p275 = scmp.ne.s32.totalorder %s264, %s265
      %p276 = scmp.eq.s32.totalorder %s30, 0
      %p277 = por %p275, %p276
      %p278 = scmp.ne.s32.totalorder %s264, %s265
      %p279 = scmp.eq.s32.totalorder %s31, 2
      %p280 = por %p278, %p279
      %p282 = scmp.ne.s32.totalorder %s265, %s281
      %p283 = scmp.eq.s32.totalorder %s31, 0
      %p284 = por %p282, %p283
      %s285 = ssub.s32 %s32, %s44
      %s286 = ssub.s32 %s33, %s40
      %s287 = sor.u32 %s285, %s286
      %p288 = scmp.eq.s32.totalorder %s287, 0
      %s290 = sadd.s32 %s289, 1
      %s291 = scalar_select %p288, %s289, %s290
      %p294 = pneg %p288
      %p295 = scmp.eq.s32.totalorder %s25, 2
      %p296 = por %p294, %p295
      %p297 = scmp.ne.s32.totalorder %s289, %s292
      %p298 = scmp.eq.s32.totalorder %s25, 0
      %p299 = por %p297, %p298
      %p300 = scmp.ne.s32.totalorder %s289, %s292
      %p301 = scmp.eq.s32.totalorder %s30, 2
      %p302 = por %p300, %p301
      %p303 = scmp.ne.s32.totalorder %s292, %s293
      %p304 = scmp.eq.s32.totalorder %s30, 0
      %p305 = por %p303, %p304
      %p306 = scmp.ne.s32.totalorder %s292, %s293
      %p307 = scmp.eq.s32.totalorder %s31, 2
      %p308 = por %p306, %p307
      %p310 = scmp.ne.s32.totalorder %s293, %s309
      %p311 = scmp.eq.s32.totalorder %s31, 0
      %p312 = por %p310, %p311
      %p313 = scmp.le.s32.totalorder 1, %s25
      %p314 = scmp.lt.s32.totalorder %s25, 4
      %p315 = pnand %p313, %p314
      %p316 = pneg %p315
      // Predicated region
      $region9: #{tpu_custom_call.1} parent=5 // pred_check
        _
      $region10: #{tpu_custom_call.1} parent=5 // pred_check_branch
        %318 = sbr.rel (%p315) target = $region12
      $region11: #{tpu_custom_call.1} parent=5 // pred_region
        %s319 = ssub.s32 %s25, 1
      $region12: #{tpu_custom_call.1} parent=5 // pred_fallthru
        _
      %p320 = scmp.lt.s32.totalorder %s25, 3
      // Predicated region
      $region13: #{tpu_custom_call.1} parent=5 // pred_check
        %p321 = pneg %p320
      $region14: #{tpu_custom_call.1} parent=5 // pred_check_branch
        %323 = sbr.rel (%p321) target = $region16
      $region15: #{tpu_custom_call.1} parent=5 // pred_region
        // Predicated region
        $region17: #{tpu_custom_call.1} parent=15 // pred_check
          %p324 = pneg %p59
        $region18: #{tpu_custom_call.1} parent=15 // pred_check_branch
          %326 = sbr.rel (%p324) target = $region20
        $region19: #{tpu_custom_call.1} parent=15 // pred_region
          %s327 = smul.u32 2, %s33
          %p328 = scmp.lt.s32.totalorder %s32, 2
          %s329 = scalar_select %p328, %s32, 2
          %p330 = scmp.lt.s32.totalorder %s327, 1
          %s331 = scalar_select %p330, %s327, 1
          %s332 = smul.addr %s329, 2
          %s333 = sadd.s32 %s331, %s332
          %s334 = smul.addr %s333, 8
          %s335 = scalar_lea.vmem %s0, %s334
          %s336 = smul.u32 2, %s33
        $region20: #{tpu_custom_call.1} parent=15 // pred_fallthru
          _
        // Predicated region
        $region21: #{tpu_custom_call.1} parent=15 // pred_check
          %p337 = pneg %p87
        $region22: #{tpu_custom_call.1} parent=15 // pred_check_branch
          %339 = sbr.rel (%p337) target = $region24
        $region23: #{tpu_custom_call.1} parent=15 // pred_region
          %s340 = smul.u32 2, %s33
          %p341 = scmp.lt.s32.totalorder %s32, 2
          %s342 = scalar_select %p341, %s32, 2
          %p343 = scmp.lt.s32.totalorder %s340, 1
          %s344 = scalar_select %p343, %s340, 1
          %s345 = smul.addr %s342, 2
          %s346 = sadd.s32 %s344, %s345
          %s347 = smul.addr %s346, 8
          %s348 = scalar_lea.vmem %s1, %s347
          %s349 = smul.u32 2, %s33
        $region24: #{tpu_custom_call.1} parent=15 // pred_fallthru
          _
        // Predicated region
        $region25: #{tpu_custom_call.1} parent=15 // pred_check
          %p350 = pneg %p113
        $region26: #{tpu_custom_call.1} parent=15 // pred_check_branch
          %352 = sbr.rel (%p350) target = $region28
        $region27: #{tpu_custom_call.1} parent=15 // pred_region
          %s353 = sand.u32 %s103, 1
          %s354 = scalar_lea.sflag [#allocation3], %s353
          %s355 = sand.u32 %s103, 1
          %s356 = smul.addr %s355, 32
          %s357 = scalar_lea.vmem [#allocation2], %s356
          %359 = vsyncadd %s354, 0
          %s360 = smul.addr %s32, 8
          %s361 = smul.addr %s360, 4
          %s362 = scalar_lea.hbm %s2, %s361
          %s363 = sshll.u32 %s362, 4
          %s364 = int_to_ptr.hbm [resolvable:$true] %s363
          %s365 = sshll.u32 %s357, 4
          %s366 = int_to_ptr.vmem [resolvable:$true] %s365
          %371 = dma.hbm_to_vmem [thread:$0]  %s364, 512, %s366, %s354, 128, 128, 8
        $region28: #{tpu_custom_call.1} parent=15 // pred_fallthru
          _
        // Predicated region
        $region29: #{tpu_custom_call.1} parent=15 // pred_check
          %p372 = pneg %p139
        $region30: #{tpu_custom_call.1} parent=15 // pred_check_branch
          %374 = sbr.rel (%p372) target = $region32
        $region31: #{tpu_custom_call.1} parent=15 // pred_region
          %p375 = scmp.lt.s32.totalorder %s32, 2
          %s376 = scalar_select %p375, %s32, 2
          %s377 = smul.addr %s376, 2
          %s378 = scalar_lea.vmem %s3, %s377
        $region32: #{tpu_custom_call.1} parent=15 // pred_fallthru
          _
        // Predicated region
        $region33: #{tpu_custom_call.1} parent=15 // pred_check
          %p379 = pneg %p165
        $region34: #{tpu_custom_call.1} parent=15 // pred_check_branch
          %381 = sbr.rel (%p379) target = $region36
        $region35: #{tpu_custom_call.1} parent=15 // pred_region
          %s382 = sand.u32 %s25, 1
          %s383 = scalar_lea.sflag [#allocation6], %s382
          %s384 = sand.u32 %s155, 1
          %s385 = smul.addr %s384, 16
          %s386 = scalar_lea.vmem [#allocation5], %s385
          %388 = vsyncadd %s383, 0
          %s389 = smul.addr %s32, 4
          %s390 = smul.addr %s389, 4
          %s391 = scalar_lea.hbm %s4, %s390
          %s392 = sshll.u32 %s391, 4
          %s393 = int_to_ptr.hbm [resolvable:$true] %s392
          %s394 = sshll.u32 %s386, 4
          %s395 = int_to_ptr.vmem [resolvable:$true] %s394
          %400 = dma.hbm_to_vmem [thread:$0]  %s393, 256, %s395, %s383, 64, 64, 4
        $region36: #{tpu_custom_call.1} parent=15 // pred_fallthru
          _
        // Predicated region
        $region37: #{tpu_custom_call.1} parent=15 // pred_check
          %p401 = pneg %p191
        $region38: #{tpu_custom_call.1} parent=15 // pred_check_branch
          %403 = sbr.rel (%p401) target = $region40
        $region39: #{tpu_custom_call.1} parent=15 // pred_region
          %p404 = scmp.lt.s32.totalorder %s32, 2
          %s405 = scalar_select %p404, %s32, 2
          %s406 = scalar_lea.vmem %s5, %s405
        $region40: #{tpu_custom_call.1} parent=15 // pred_fallthru
          _
        // Predicated region
        $region41: #{tpu_custom_call.1} parent=15 // pred_check
          %p407 = pneg %p217
        $region42: #{tpu_custom_call.1} parent=15 // pred_check_branch
          %409 = sbr.rel (%p407) target = $region44
        $region43: #{tpu_custom_call.1} parent=15 // pred_region
          %s410 = sand.u32 %s25, 1
          %s411 = scalar_lea.sflag [#allocation6], %s410
          %s412 = sand.u32 %s207, 1
          %s413 = smul.addr %s412, 16
          %s414 = scalar_lea.vmem [#allocation7], %s413
          %416 = vsyncadd %s411, 0
          %s417 = smul.addr %s32, 4
          %s418 = smul.addr %s417, 4
          %s419 = scalar_lea.hbm %s6, %s418
          %s420 = sshll.u32 %s419, 4
          %s421 = int_to_ptr.hbm [resolvable:$true] %s420
          %s422 = sshll.u32 %s414, 4
          %s423 = int_to_ptr.vmem [resolvable:$true] %s422
          %428 = dma.hbm_to_vmem [thread:$0]  %s421, 256, %s423, %s411, 64, 64, 4
        $region44: #{tpu_custom_call.1} parent=15 // pred_fallthru
          _
        // Predicated region
        $region45: #{tpu_custom_call.1} parent=15 // pred_check
          %p429 = pneg %p243
        $region46: #{tpu_custom_call.1} parent=15 // pred_check_branch
          %431 = sbr.rel (%p429) target = $region48
        $region47: #{tpu_custom_call.1} parent=15 // pred_region
          %p432 = scmp.lt.s32.totalorder %s32, 2
          %s433 = scalar_select %p432, %s32, 2
          %s434 = scalar_lea.vmem %s7, %s433
        $region48: #{tpu_custom_call.1} parent=15 // pred_fallthru
          _
      $region16: #{tpu_custom_call.1} parent=5 // pred_fallthru
        _
      %p435 = scmp.le.s32.totalorder 1, %s25
      %p436 = scmp.lt.s32.totalorder %s25, 4
      %p437 = pnand %p435, %p436
      %p438 = pneg %p437
      // Predicated region
      $region49: #{tpu_custom_call.1} parent=5 // pred_check
        _
      $region50: #{tpu_custom_call.1} parent=5 // pred_check_branch
        %440 = sbr.rel (%p437) target = $region52
      $region51: #{tpu_custom_call.1} parent=5 // pred_region
        %s441 = ssub.s32 %s25, 1
        %s442 = sand.u32 %s106, 1
        %s443 = scalar_lea.sflag [#allocation3], %s442
        %s444 = sand.u32 %s106, 1
        %s445 = smul.addr %s444, 32
        %s446 = scalar_lea.vmem [#allocation2], %s445
        // Predicated region
        $region53: #{tpu_custom_call.1} parent=51 // pred_check
          %p447 = pneg %p119
        $region54: #{tpu_custom_call.1} parent=51 // pred_check_branch
          %449 = sbr.rel (%p447) target = $region56
        $region55: #{tpu_custom_call.1} parent=51 // pred_region
          %451 = dma.done %s443, 512
        $region56: #{tpu_custom_call.1} parent=51 // pred_fallthru
          _
        %s452 = sand.u32 %s30, 1
        %s453 = scalar_lea.sflag [#allocation6], %s452
        %s454 = sand.u32 %s158, 1
        %s455 = smul.addr %s454, 16
        %s456 = scalar_lea.vmem [#allocation5], %s455
        // Predicated region
        $region57: #{tpu_custom_call.1} parent=51 // pred_check
          %p457 = pneg %p171
        $region58: #{tpu_custom_call.1} parent=51 // pred_check_branch
          %459 = sbr.rel (%p457) target = $region60
        $region59: #{tpu_custom_call.1} parent=51 // pred_region
          %461 = dma.done %s453, 256
        $region60: #{tpu_custom_call.1} parent=51 // pred_fallthru
          _
        %s462 = sand.u32 %s30, 1
        %s463 = scalar_lea.sflag [#allocation6], %s462
        %s464 = sand.u32 %s210, 1
        %s465 = smul.addr %s464, 16
        %s466 = scalar_lea.vmem [#allocation7], %s465
        // Predicated region
        $region61: #{tpu_custom_call.1} parent=51 // pred_check
          %p467 = pneg %p223
        $region62: #{tpu_custom_call.1} parent=51 // pred_check_branch
          %469 = sbr.rel (%p467) target = $region64
        $region63: #{tpu_custom_call.1} parent=51 // pred_region
          %471 = dma.done %s463, 256
        $region64: #{tpu_custom_call.1} parent=51 // pred_fallthru
          _
        %s472 = smul.u32 2, %s35
        %p473 = scmp.lt.s32.totalorder %s34, 2
        %s474 = scalar_select %p473, %s34, 2
        %p475 = scmp.lt.s32.totalorder %s472, 1
        %s476 = scalar_select %p475, %s472, 1
        %s477 = smul.addr %s474, 2
        %s478 = sadd.s32 %s476, %s477
        %s479 = smul.addr %s478, 8
        %s480 = scalar_lea.vmem %s0, %s479
        %p481 = pneg %p65
        %p482 = pneg %p62
        %s483 = smul.u32 2, %s35
        %p484 = scmp.lt.s32.totalorder %s34, 2
        %s485 = scalar_select %p484, %s34, 2
        %p486 = scmp.lt.s32.totalorder %s483, 1
        %s487 = scalar_select %p486, %s483, 1
        %s488 = smul.addr %s485, 2
        %s489 = sadd.s32 %s487, %s488
        %s490 = smul.addr %s489, 8
        %s491 = scalar_lea.vmem %s1, %s490
        %p492 = pneg %p93
        %p493 = pneg %p90
        %s494 = sand.u32 %s106, 1
        %s495 = scalar_lea.sflag [#allocation3], %s494
        %s496 = sand.u32 %s106, 1
        %s497 = smul.addr %s496, 32
        %s498 = scalar_lea.vmem [#allocation2], %s497
        %p499 = pneg %p119
        %p500 = pneg %p116
        %p501 = scmp.lt.s32.totalorder %s34, 2
        %s502 = scalar_select %p501, %s34, 2
        %s503 = smul.addr %s502, 2
        %s504 = scalar_lea.vmem %s3, %s503
        %p505 = pneg %p145
        %p506 = pneg %p142
        %s507 = sand.u32 %s30, 1
        %s508 = scalar_lea.sflag [#allocation6], %s507
        %s509 = sand.u32 %s158, 1
        %s510 = smul.addr %s509, 16
        %s511 = scalar_lea.vmem [#allocation5], %s510
        %p512 = pneg %p171
        %p513 = pneg %p168
        %p514 = scmp.lt.s32.totalorder %s34, 2
        %s515 = scalar_select %p514, %s34, 2
        %s516 = scalar_lea.vmem %s5, %s515
        %p517 = pneg %p197
        %p518 = pneg %p194
        %s519 = sand.u32 %s30, 1
        %s520 = scalar_lea.sflag [#allocation6], %s519
        %s521 = sand.u32 %s210, 1
        %s522 = smul.addr %s521, 16
        %s523 = scalar_lea.vmem [#allocation7], %s522
        %p524 = pneg %p223
        %p525 = pneg %p220
        %p526 = scmp.lt.s32.totalorder %s34, 2
        %s527 = scalar_select %p526, %s34, 2
        %s528 = scalar_lea.vmem %s7, %s527
        %p529 = pneg %p249
        %p530 = pneg %p246
        %p531 = pneg %p277
        %p532 = pneg %p274
        %s533 = sand.u32 %s264, 1
        %s534 = scalar_lea.sflag [#allocation4], %s533
        %s535 = sand.u32 %s264, 1
        %s536 = smul.addr %s535, 16
        %s537 = scalar_lea.vmem [#allocation8], %s536
        %p538 = pneg %p305
        %p539 = pneg %p302
        %s540 = smul.u32 2, %s35
        %p541 = scmp.lt.s32.totalorder %s34, 2
        %s542 = scalar_select %p541, %s34, 2
        %p543 = scmp.lt.s32.totalorder %s540, 1
        %s544 = scalar_select %p543, %s540, 1
        %s545 = smul.addr %s542, 2
        %s546 = sadd.s32 %s544, %s545
        %s547 = smul.addr %s546, 8
        %s548 = scalar_lea.vmem %s9, %s547
        %s549 = smul.u32 2, %s35
        %p550 = scmp.lt.s32.totalorder %s34, 2
        %s551 = scalar_select %p550, %s34, 2
        %p552 = scmp.lt.s32.totalorder %s549, 1
        %s553 = scalar_select %p552, %s549, 1
        %s554 = smul.addr %s551, 2
        %s555 = sadd.s32 %s553, %s554
        %s556 = smul.addr %s555, 8
        %s557 = scalar_lea.vmem %s0, %s556
        %s558 = smul.u32 2, %s35
        %s559 = smul.u32 2, %s35
        %p560 = scmp.lt.s32.totalorder %s34, 2
        %s561 = scalar_select %p560, %s34, 2
        %p562 = scmp.lt.s32.totalorder %s559, 1
        %s563 = scalar_select %p562, %s559, 1
        %s564 = smul.addr %s561, 2
        %s565 = sadd.s32 %s563, %s564
        %s566 = smul.addr %s565, 8
        %s567 = scalar_lea.vmem %s1, %s566
        %s568 = smul.u32 2, %s35
        %p569 = scmp.lt.s32.totalorder %s34, 2
        %s570 = scalar_select %p569, %s34, 2
        %s571 = smul.addr %s570, 2
        %s572 = scalar_lea.vmem %s3, %s571
        %p573 = scmp.lt.s32.totalorder %s34, 2
        %s574 = scalar_select %p573, %s34, 2
        %s575 = scalar_lea.vmem %s5, %s574
        %p576 = scmp.lt.s32.totalorder %s34, 2
        %s577 = scalar_select %p576, %s34, 2
        %s578 = scalar_lea.vmem %s7, %s577
        %s579 = smul.u32 2, %s35
        %s580 = smul.u32 2, %s35
        %p581 = scmp.lt.s32.totalorder %s34, 2
        %s582 = scalar_select %p581, %s34, 2
        %p583 = scmp.lt.s32.totalorder %s580, 1
        %s584 = scalar_select %p583, %s580, 1
        %s585 = smul.addr %s582, 2
        %s586 = sadd.s32 %s584, %s585
        %s587 = smul.addr %s586, 8
        %s588 = scalar_lea.vmem %s9, %s587
        %s589 = smul.u32 2, %s35
        %v591 = vld [vmem:[%s557] sm:$0xff]
        %v592 = vld [vmem:[%s557 + $0x8] sm:$0xff]
        %v593 = vpack.c.bf16 %v592, %v591
        %v594 = vld [vmem:[%s446] sm:$0xff]
        %v595 = vld [vmem:[%s446 + $0x8] sm:$0xff]
        %v596 = vld [vmem:[%s446 + $0x10] sm:$0xff]
        %v597 = vld [vmem:[%s446 + $0x18] sm:$0xff]
        %v598 = vld [vmem:[%s572] sm:$0x3]
        %v600 = vperm.slane %v598, 0
        %v601 = vperm.slane %v598, 1
        %v608 = vunpack.c.l.b16 %v594
        %v609 = vunpack.c.h.b16 %v594
        %v610 = vunpack.c.l.b16 %v595
        %v611 = vunpack.c.h.b16 %v595
        %v612 = vunpack.c.l.b16 %v596
        %v613 = vunpack.c.h.b16 %v596
        %v614 = vunpack.c.l.b16 %v597
        %v615 = vunpack.c.h.b16 %v597
        %v616 = vpack.c.b16 %v610, %v608
        %v617 = vpack.c.b16 %v611, %v609
        %v618 = vpack.c.b16 %v614, %v612
        %v619 = vpack.c.b16 %v615, %v613
        %vm624 = vcmask 261120
        %v626 = vsel %vm624, %v593, 0
        %628 = vmatpush.bf16.msra.mxu0 0
        %629 = vmatpush.bf16.msra.mxu0 0
        %630 = vmatpush.bf16.msra.mxu0 0
        %631 = vmatpush.bf16.msra.mxu0 0
        %632 = vmatpush.bf16.msra.mxu0 0
        %633 = vmatpush.bf16.msra.mxu0 0
        %634 = vmatpush.bf16.msra.mxu0 %v618
        %635 = vmatpush.bf16.msra.mxu0 %v616
        %636 = vmatmul.bf16.gmra.mxu0 %v626
        %v637 = vpop.f32.mrf.mxu0
        %v638 = vadd.f32 %v600, %v637
        %v639 = vpop.f32.mrf.mxu0
        %v640 = vadd.f32 %v600, %v639
        %641 = vdwg.mxu0
        %642 = vmatpush.bf16.msra.mxu0 0
        %643 = vmatpush.bf16.msra.mxu0 0
        %644 = vmatpush.bf16.msra.mxu0 0
        %645 = vmatpush.bf16.msra.mxu0 0
        %646 = vmatpush.bf16.msra.mxu0 0
        %647 = vmatpush.bf16.msra.mxu0 0
        %648 = vmatpush.bf16.msra.mxu0 %v619
        %649 = vmatpush.bf16.msra.mxu0 %v617
        %650 = vmatmul.bf16.gmra.mxu0 %v626
        %v651 = vpop.f32.mrf.mxu0
        %v652 = vadd.f32 %v601, %v651
        %v653 = vpop.f32.mrf.mxu0
        %v654 = vadd.f32 %v601, %v653
        %655 = vdwg.mxu0
        %656 = vst [vmem:[%s537] sm:$0xff] %v638
        %657 = vst [vmem:[%s537 + $0x8] sm:$0xff] %v640
        %v658 = vmax.f32 %v652, 0.0
        %v659 = vmax.f32 %v654, 0.0
        %v660 = vpack.c.bf16 %v659, %v658
        %v661 = vld [vmem:[%s456] sm:$0xf]
        %v662 = vld [vmem:[%s456 + $0x4] sm:$0xf]
        %v663 = vld [vmem:[%s456 + $0x8] sm:$0xf]
        %v664 = vld [vmem:[%s456 + $0xc] sm:$0xf]
        %v665 = vld [vmem:[%s575] sm:$0x1]
        %v667 = vperm.slane %v665, 0
        %v673 = vunpack.c.l.b16 %v661
        %v674 = vunpack.c.l.b16 %v662
        %v675 = vunpack.c.l.b16 %v663
        %v676 = vunpack.c.l.b16 %v664
        %v677 = vpack.c.b16 %v674, %v673
        %v678 = vpack.c.b16 %v676, %v675
        %v682 = vsel %vm624, %v660, 0
        %684 = vmatpush.bf16.msra.mxu0 0
        %685 = vmatpush.bf16.msra.mxu0 0
        %686 = vmatpush.bf16.msra.mxu0 0
        %687 = vmatpush.bf16.msra.mxu0 0
        %688 = vmatpush.bf16.msra.mxu0 0
        %689 = vmatpush.bf16.msra.mxu0 0
        %690 = vmatpush.bf16.msra.mxu0 %v678
        %691 = vmatpush.bf16.msra.mxu0 %v677
        %692 = vmatmul.bf16.gmra.mxu0 %v682
        %v693 = vpop.f32.mrf.mxu0
        %v694 = vadd.f32 %v667, %v693
        %v695 = vpop.f32.mrf.mxu0
        %v696 = vadd.f32 %v667, %v695
        %697 = vdwg.mxu0
        %v698 = vmax.f32 %v694, 0.0
        %v699 = vmax.f32 %v696, 0.0
        %v700 = vpack.c.bf16 %v699, %v698
        %v701 = vld [vmem:[%s466] sm:$0xf]
        %v702 = vld [vmem:[%s466 + $0x4] sm:$0xf]
        %v703 = vld [vmem:[%s466 + $0x8] sm:$0xf]
        %v704 = vld [vmem:[%s466 + $0xc] sm:$0xf]
        %v705 = vld [vmem:[%s578] sm:$0x1]
        %v707 = vperm.slane %v705, 0
        %v713 = vunpack.c.l.b16 %v701
        %v714 = vunpack.c.l.b16 %v702
        %v715 = vunpack.c.l.b16 %v703
        %v716 = vunpack.c.l.b16 %v704
        %v717 = vpack.c.b16 %v714, %v713
        %v718 = vpack.c.b16 %v716, %v715
        %v722 = vsel %vm624, %v700, 0
        %724 = vmatpush.bf16.msra.mxu0 0
        %725 = vmatpush.bf16.msra.mxu0 0
        %726 = vmatpush.bf16.msra.mxu0 0
        %727 = vmatpush.bf16.msra.mxu0 0
        %728 = vmatpush.bf16.msra.mxu0 0
        %729 = vmatpush.bf16.msra.mxu0 0
        %730 = vmatpush.bf16.msra.mxu0 %v718
        %731 = vmatpush.bf16.msra.mxu0 %v717
        %732 = vmatmul.bf16.gmra.mxu0 %v722
        %v733 = vpop.f32.mrf.mxu0
        %v734 = vadd.f32 %v707, %v733
        %v735 = vpop.f32.mrf.mxu0
        %v736 = vadd.f32 %v707, %v735
        %737 = vdwg.mxu0
        %v738 = vld [vmem:[%s567] sm:$0xff]
        %v739 = vld [vmem:[%s567 + $0x8] sm:$0xff]
        %v740 = vadd.f32 %v738, %v734
        %v741 = vadd.f32 %v739, %v736
        %v742 = vxor.u32 %v740, 2147483648
        %v743 = vxor.u32 %v741, 2147483648
        %v744 = vmul.f32 %v742, 1.442695
        %v745 = vpow.pop %v744
        %v746 = vmul.f32 %v743, 1.442695
        %v747 = vpow.pop %v746
        %v748 = vadd.f32 %v745, 1.0
        %v749 = vadd.f32 %v747, 1.0
        %v750 = vrcp.pop %v748
        %v751 = vmul.f32 %v748, %v750
        %v752 = vsub.f32 1.0, %v751
        %v753 = vmul.f32 %v750, %v752
        %v754 = vadd.f32 %v750, %v753
        %vm755 = vweird.f32 %v748
        %vm756 = vweird.f32 %v750
        %vm757 = vmor %vm755, %vm756
        %v758 = vsel %vm757, %v750, %v754
        %v759 = vand.u32 2147483647, %v748
        %vm760 = vcmp.eq.f32.partialorder %v759, 8.507059e+37
        %v761 = vand.u32 %v748, 2147483648
        %v762 = vor.u32 1.1754944e-38, %v761
        %v763 = vsel %vm760, %v762, %v758
        %v764 = vmul.f32 1.0, %v763
        %v765 = vrcp.pop %v749
        %v766 = vmul.f32 %v749, %v765
        %v767 = vsub.f32 1.0, %v766
        %v768 = vmul.f32 %v765, %v767
        %v769 = vadd.f32 %v765, %v768
        %vm770 = vweird.f32 %v749
        %vm771 = vweird.f32 %v765
        %vm772 = vmor %vm770, %vm771
        %v773 = vsel %vm772, %v765, %v769
        %v774 = vand.u32 2147483647, %v749
        %vm775 = vcmp.eq.f32.partialorder %v774, 8.507059e+37
        %v776 = vand.u32 %v749, 2147483648
        %v777 = vor.u32 1.1754944e-38, %v776
        %v778 = vsel %vm775, %v777, %v773
        %v779 = vmul.f32 1.0, %v778
        %vm780 = vcmask 64512
        %781 = vst.msk [vmem:[%s588] sm:$0xff] %vm780, %v764
        %782 = vst.msk [vmem:[%s588 + $0x8] sm:$0xff] %vm780, %v779
        %s783 = sand.u32 %s264, 1
        %s784 = scalar_lea.sflag [#allocation4], %s783
        %s785 = sand.u32 %s264, 1
        %s786 = smul.addr %s785, 16
        %s787 = scalar_lea.vmem [#allocation8], %s786
        %s788 = smul.u32 2, %s35
        %p789 = scmp.lt.s32.totalorder %s34, 2
        %s790 = scalar_select %p789, %s34, 2
        %p791 = scmp.lt.s32.totalorder %s788, 1
        %s792 = scalar_select %p791, %s788, 1
        %s793 = smul.addr %s790, 2
        %s794 = sadd.s32 %s792, %s793
        %s795 = smul.addr %s794, 8
        %s796 = scalar_lea.vmem %s9, %s795
        // Predicated region
        $region65: #{tpu_custom_call.1} parent=51 // pred_check
          %p797 = pneg %p274
        $region66: #{tpu_custom_call.1} parent=51 // pred_check_branch
          %799 = sbr.rel (%p797) target = $region68
        $region67: #{tpu_custom_call.1} parent=51 // pred_region
          %s800 = smul.u32 2, %s35
          %802 = vsyncadd %s784, 0
          %s803 = smul.addr %s34, 2
          %s804 = sadd.s32 %s800, %s803
          %s805 = smul.addr %s804, 8
          %s806 = scalar_lea.hbm %s8, %s805
          %s807 = sshll.u32 %s787, 4
          %s808 = int_to_ptr.vmem [resolvable:$true] %s807
          %s809 = sshll.u32 %s806, 4
          %s810 = int_to_ptr.hbm [resolvable:$true] %s809
          %815 = dma.vmem_to_hbm [thread:$0]  %s808, 256, %s810, %s784, 128, 128, 8
        $region68: #{tpu_custom_call.1} parent=51 // pred_fallthru
          _
        // Predicated region
        $region69: #{tpu_custom_call.1} parent=51 // pred_check
          %p816 = pneg %p302
        $region70: #{tpu_custom_call.1} parent=51 // pred_check_branch
          %818 = sbr.rel (%p816) target = $region72
        $region71: #{tpu_custom_call.1} parent=51 // pred_region
          %s819 = smul.u32 2, %s35
        $region72: #{tpu_custom_call.1} parent=51 // pred_fallthru
          _
      $region52: #{tpu_custom_call.1} parent=5 // pred_fallthru
        _
      %p820 = scmp.le.s32.totalorder 2, %s25
      // Predicated region
      $region73: #{tpu_custom_call.1} parent=5 // pred_check
        %p821 = pneg %p820
      $region74: #{tpu_custom_call.1} parent=5 // pred_check_branch
        %823 = sbr.rel (%p821) target = $region76
      $region75: #{tpu_custom_call.1} parent=5 // pred_region
        %s824 = ssub.s32 %s25, 2
        // Predicated region
        $region77: #{tpu_custom_call.1} parent=75 // pred_check
          %p825 = pneg %p280
        $region78: #{tpu_custom_call.1} parent=75 // pred_check_branch
          %827 = sbr.rel (%p825) target = $region80
        $region79: #{tpu_custom_call.1} parent=75 // pred_region
          %s828 = sand.u32 %s265, 1
          %s829 = scalar_lea.sflag [#allocation4], %s828
          %s830 = sand.u32 %s265, 1
          %s831 = smul.addr %s830, 16
          %s832 = scalar_lea.vmem [#allocation8], %s831
          %834 = dma.done %s829, 256
        $region80: #{tpu_custom_call.1} parent=75 // pred_fallthru
          _
        // Predicated region
        $region81: #{tpu_custom_call.1} parent=75 // pred_check
          %p835 = pneg %p308
        $region82: #{tpu_custom_call.1} parent=75 // pred_check_branch
          %837 = sbr.rel (%p835) target = $region84
        $region83: #{tpu_custom_call.1} parent=75 // pred_region
          %s838 = smul.u32 2, %s37
          %p839 = scmp.lt.s32.totalorder %s36, 2
          %s840 = scalar_select %p839, %s36, 2
          %p841 = scmp.lt.s32.totalorder %s838, 1
          %s842 = scalar_select %p841, %s838, 1
          %s843 = smul.addr %s840, 2
          %s844 = sadd.s32 %s842, %s843
          %s845 = smul.addr %s844, 8
          %s846 = scalar_lea.vmem %s9, %s845
        $region84: #{tpu_custom_call.1} parent=75 // pred_fallthru
          _
      $region76: #{tpu_custom_call.1} parent=5 // pred_fallthru
        _
    $region6: #{tpu_custom_call.1} parent=1 // loop_footer
      %s29 = sadd.s32 1, %s25
    $region7: #{tpu_custom_call.1} parent=1 // loop_footer_branch
      %24 = sbr.rel target = $region3
    $region8: #{tpu_custom_call.1} parent=1 // loop_exit
      _
    %847 = vsyncpa [#allocation3], 1
    %s848 = scalar_lea.sflag [#allocation3], 1
    %849 = vsyncpa %s848, 1
    %850 = vsyncpa [#allocation6], 1
    %s851 = scalar_lea.sflag [#allocation6], 1
    %852 = vsyncpa %s851, 1
    %853 = vsyncpa [#allocation4], 1
    %s854 = scalar_lea.sflag [#allocation4], 1
    %855 = vsyncpa %s854, 1

</llo_original>
